<compile_context>
chip_gen: v7x
topology: tpu7x:2x2x1
jax: 0.10.0
libtpu: 0.0.40
codegen_flags: <defaults>
</compile_context>

<pallas_src>
import math

import jax
import jax.numpy as jnp
from jax.experimental import pallas as pl
from jax.experimental.pallas import tpu as pltpu


# ----------------------------------------------------------------------------
# Pallas kernel: prepend the CLS embedding row to every sequence in the batch.
# ----------------------------------------------------------------------------
def _cls_embedding_kernel(w_ref, x_hbm, o_hbm, cls_buf, sems):
    # w_ref   : (1, D)       VMEM   learnable CLS embedding
    # x_hbm   : (B, S, D)    HBM    input token embeddings (never staged in VMEM)
    # o_hbm   : (B, S+1, D)  HBM    output
    # cls_buf : (B, 1, D)    VMEM   scratch holding the broadcast CLS rows
    # sems    : (2,)         DMA completion semaphores
    B, _, D = cls_buf.shape

    # Bulk move: strided HBM -> HBM DMA. The DMA engine absorbs the +1-row
    # destination offset/stride for free (no masked vst / XLU sublane rotates).
    bulk = pltpu.make_async_copy(x_hbm, o_hbm.at[:, 1:, :], sems.at[0])
    bulk.start()

    # CLS rows: broadcast the weight once into VMEM, then one small DMA out.
    cls_buf[...] = jnp.broadcast_to(w_ref[...], (B, 1, D)).astype(cls_buf.dtype)
    cls = pltpu.make_async_copy(cls_buf, o_hbm.at[:, 0:1, :], sems.at[1])
    cls.start()

    cls.wait()
    bulk.wait()


# ----------------------------------------------------------------------------
# Wrapper (mirrors CLSEmbedding.forward semantics, including input checks)
# ----------------------------------------------------------------------------
def cls_embedding(weight, x):
    """weight: (D,); x: (B, S, D) -> (B, S+1, D) with the CLS row prepended."""
    if x.ndim != 3:
        raise ValueError('The input must have three dimensions')
    if x.shape[-1] != weight.shape[-1]:
        raise ValueError('The last dimension of x must be equal to the embedding size')

    B, S, D = x.shape
    w2d = weight.reshape(1, D).astype(x.dtype)  # >=2D operand; match output dtype

    itemsize = jnp.dtype(x.dtype).itemsize
    bytes_accessed = (B * S * D + B * (S + 1) * D + D) * itemsize

    return pl.pallas_call(
        _cls_embedding_kernel,
        out_shape=jax.ShapeDtypeStruct((B, S + 1, D), x.dtype),
        in_specs=[
            pl.BlockSpec(memory_space=pltpu.MemorySpace.VMEM),  # weight -> VMEM
            pl.BlockSpec(memory_space=pl.ANY),                  # x stays in HBM
        ],
        out_specs=pl.BlockSpec(memory_space=pl.ANY),            # out stays in HBM
        scratch_shapes=[
            pltpu.VMEM((B, 1, D), x.dtype),        # broadcast CLS rows
            pltpu.SemaphoreType.DMA((2,)),         # one sem per in-flight DMA
        ],
        cost_estimate=pl.CostEstimate(
            flops=0, transcendentals=0, bytes_accessed=bytes_accessed),
    )(w2d, x)


# ----------------------------------------------------------------------------
# parameter init: uniform(-1/sqrt(d), +1/sqrt(d))  (matches _initialize_embeddings)
# ----------------------------------------------------------------------------
def init_cls_weight(key, d_embedding):
    bound = 1.0 / math.sqrt(d_embedding)
    return jax.random.uniform(key, (d_embedding,), jnp.float32, -bound, bound)


# ----------------------------------------------------------------------------
if __name__ == "__main__":
    B, S, D = 2, 8, 128  # small shapes; D = 128 keeps the minor dim lane-dense

    key = jax.random.PRNGKey(0)
    kw, kx = jax.random.split(key)
    weight = init_cls_weight(kw, D)
    x = jax.random.normal(kx, (B, S, D), jnp.float32)

    out = jax.jit(cls_embedding)(weight, x)
    out = jax.block_until_ready(out)

    # reference check (plain JAX)
    ref = jnp.concatenate(
        [jnp.broadcast_to(weight[None, None, :], (B, 1, D)), x], axis=1)
    assert out.shape == (B, S + 1, D) and out.dtype == jnp.float32
    assert jnp.array_equal(out, ref)

    print("KERNEL_OK")
</pallas_src>

<mosaic_0001>
module attributes {stable_mosaic.version = 11 : i64} {
  func.func @_cls_embedding_kernel(%arg0: memref<1x128xf32, #tpu.memory_space<vmem>>, %arg1: memref<2x8x128xf32, #tpu.memory_space<any>>, %arg2: memref<2x9x128xf32, #tpu.memory_space<any>>, %arg3: memref<2x1x128xf32, #tpu.memory_space<vmem>>, %arg4: memref<2x!tpu.dma_semaphore, #tpu.memory_space<semaphore_mem>>) attributes {dimension_semantics = [], scalar_prefetch = 0 : i64, scratch_operands = 2 : i64, tpu.core_type = #tpu.core_type<tc>} {
    %c0_i32 = arith.constant 0 : i32
    %c0_i32_0 = arith.constant 0 : i32
    %c1_i32 = arith.constant 1 : i32
    %c0_i32_1 = arith.constant 0 : i32
    %0 = tpu.memref_slice %arg2[%c0_i32_0, %c1_i32, %c0_i32_1] : memref<2x9x128xf32, #tpu.memory_space<any>> -> memref<2x8x128xf32, #tpu.memory_space<any>>
    %1 = tpu.memref_slice %arg4[%c0_i32] : memref<2x!tpu.dma_semaphore, #tpu.memory_space<semaphore_mem>> -> memref<1x!tpu.dma_semaphore, #tpu.memory_space<semaphore_mem>>
    %2 = tpu.memref_squeeze %1 : memref<1x!tpu.dma_semaphore, #tpu.memory_space<semaphore_mem>> -> memref<!tpu.dma_semaphore, #tpu.memory_space<semaphore_mem>>
    tpu.enqueue_dma source(%arg1 : memref<2x8x128xf32, #tpu.memory_space<any>>) target(%0 : memref<2x8x128xf32, #tpu.memory_space<any>>) target_semaphore(%2 : memref<!tpu.dma_semaphore, #tpu.memory_space<semaphore_mem>>)
    %c0 = arith.constant 0 : index
    %c0_2 = arith.constant 0 : index
    %3 = vector.load %arg0[%c0, %c0_2] : memref<1x128xf32, #tpu.memory_space<vmem>>, vector<1x128xf32>
    %4 = vector.shape_cast %3 : vector<1x128xf32> to vector<1x1x128xf32>
    %5 = vector.broadcast %4 : vector<1x1x128xf32> to vector<2x1x128xf32>
    %c0_3 = arith.constant 0 : index
    %c0_4 = arith.constant 0 : index
    %c0_5 = arith.constant 0 : index
    %6 = vector.load %arg3[%c0_3, %c0_4, %c0_5] : memref<2x1x128xf32, #tpu.memory_space<vmem>>, vector<2x1x128xf32>
    tpu.vector_store %arg3[%c0_3, %c0_4, %c0_5], %5 {strides = array<i32>} : memref<2x1x128xf32, #tpu.memory_space<vmem>>, vector<2x1x128xf32>,
    %c1_i32_6 = arith.constant 1 : i32
    %c0_i32_7 = arith.constant 0 : i32
    %c0_i32_8 = arith.constant 0 : i32
    %c0_i32_9 = arith.constant 0 : i32
    %7 = tpu.memref_slice %arg2[%c0_i32_7, %c0_i32_8, %c0_i32_9] : memref<2x9x128xf32, #tpu.memory_space<any>> -> memref<2x1x128xf32, #tpu.memory_space<any>>
    %8 = tpu.memref_slice %arg4[%c1_i32_6] : memref<2x!tpu.dma_semaphore, #tpu.memory_space<semaphore_mem>> -> memref<1x!tpu.dma_semaphore, #tpu.memory_space<semaphore_mem>>
    %9 = tpu.memref_squeeze %8 : memref<1x!tpu.dma_semaphore, #tpu.memory_space<semaphore_mem>> -> memref<!tpu.dma_semaphore, #tpu.memory_space<semaphore_mem>>
    tpu.enqueue_dma source(%arg3 : memref<2x1x128xf32, #tpu.memory_space<vmem>>) target(%7 : memref<2x1x128xf32, #tpu.memory_space<any>>) target_semaphore(%9 : memref<!tpu.dma_semaphore, #tpu.memory_space<semaphore_mem>>)
    %c1_i32_10 = arith.constant 1 : i32
    %c0_i32_11 = arith.constant 0 : i32
    %c0_i32_12 = arith.constant 0 : i32
    %c0_i32_13 = arith.constant 0 : i32
    %10 = tpu.memref_slice %arg2[%c0_i32_11, %c0_i32_12, %c0_i32_13] : memref<2x9x128xf32, #tpu.memory_space<any>> -> memref<2x1x128xf32, #tpu.memory_space<any>>
    %11 = tpu.memref_slice %arg4[%c1_i32_10] : memref<2x!tpu.dma_semaphore, #tpu.memory_space<semaphore_mem>> -> memref<1x!tpu.dma_semaphore, #tpu.memory_space<semaphore_mem>>
    %12 = tpu.memref_squeeze %11 : memref<1x!tpu.dma_semaphore, #tpu.memory_space<semaphore_mem>> -> memref<!tpu.dma_semaphore, #tpu.memory_space<semaphore_mem>>
    tpu.wait_dma2 semaphore(%12 : memref<!tpu.dma_semaphore, #tpu.memory_space<semaphore_mem>>) src(%arg3 : memref<2x1x128xf32, #tpu.memory_space<vmem>>) dst(%10 : memref<2x1x128xf32, #tpu.memory_space<any>>)
    %c0_i32_14 = arith.constant 0 : i32
    %c0_i32_15 = arith.constant 0 : i32
    %c1_i32_16 = arith.constant 1 : i32
    %c0_i32_17 = arith.constant 0 : i32
    %13 = tpu.memref_slice %arg2[%c0_i32_15, %c1_i32_16, %c0_i32_17] : memref<2x9x128xf32, #tpu.memory_space<any>> -> memref<2x8x128xf32, #tpu.memory_space<any>>
    %14 = tpu.memref_slice %arg4[%c0_i32_14] : memref<2x!tpu.dma_semaphore, #tpu.memory_space<semaphore_mem>> -> memref<1x!tpu.dma_semaphore, #tpu.memory_space<semaphore_mem>>
    %15 = tpu.memref_squeeze %14 : memref<1x!tpu.dma_semaphore, #tpu.memory_space<semaphore_mem>> -> memref<!tpu.dma_semaphore, #tpu.memory_space<semaphore_mem>>
    tpu.wait_dma2 semaphore(%15 : memref<!tpu.dma_semaphore, #tpu.memory_space<semaphore_mem>>) src(%arg1 : memref<2x8x128xf32, #tpu.memory_space<any>>) dst(%13 : memref<2x8x128xf32, #tpu.memory_space<any>>)
    return
  }
}

</mosaic_0001>

<llo_original>
// kernel: cls_embedding.1
$region0: #{cls_embedding.1}
  #allocation0 [shape = 'u32[]', space=smem, size = 0x4, offset = 0x4, fixed_abs, tag = 'smem constant byte address 0x4 - core index']
  #allocation1 [shape = 'u32[144,128]{1,0:T(1,128)}', space=vmem, size = 0x12000, scoped, tag = 'internal scratch']
  #allocation2 [shape = 'f32[2,1,128]{2,1,0:T(1,128)}', space=vmem, size = 0x400, scoped, tag = 'scratch operand']
  #allocation3 [shape = 's32[2]{0}', space=sflag, size = 0x8, scoped, tag = 'scratch operand']
  #allocation4 [shape = 's32[]', space=sflag, size = 0x4, offset = 0, fixed_abs, tag = 'sflag constant byte address 0x0 - dummy sync flag']
  #allocation5 [shape = 's32[]', space=sflag, size = 0x4, offset = 0, fixed_abs, tag = 'sflag constant byte address 0x0 - dummy sync flag']
  %s0 = inlined_call_operand.vmem [shape: f32[1,128], index: 0, kind: input, shape index: {}]
  %s1 = inlined_call_operand.hbm [shape: f32[2,8,128], index: 1, kind: input, shape index: {}]
  %s2 = inlined_call_operand.vmem [shape: f32[2,9,128], index: 2, kind: output, shape index: {}]
  %s3 = sld [smem:[#allocation0]]
  $region36: #{cls_embedding.1} parent=0
    _
  %s5 = ssub.s32 1, %s3
  %s6 = scalar_select 0, %s5, %s3
  // Predicated region
  $region2: #{cls_embedding.1} parent=0 // pred_check
    _
  $region3: #{cls_embedding.1} parent=0 // pred_check_branch
    %8 = sbr.rel (0) target = $region5
  $region4: #{cls_embedding.1} parent=0 // pred_region
    _
  $region5: #{cls_embedding.1} parent=0 // pred_fallthru
    _
  %s9 = scalar_lea.vmem %s2, 1
  %s11 = sshll.u32 %s9, 4
  %s12 = int_to_ptr.vmem [resolvable:$true] %s11
  %14 = dma.hbm_to_vmem [thread:$0]  %s1, 256, %s12, [#allocation3], 128, 256, 8
  %v15 = vld [vmem:[%s0] sm:$0x1]
  %16 = vst [vmem:[#allocation2] sm:$0x1] %v15
  %17 = vst [vmem:[#allocation2 + $0x1] sm:$0x1] %v15
  %s18 = scalar_lea.sflag [#allocation3], 1
  %p20 = scmp.lt.u32.totalorder 1, 8
  %p21 = pneg %p20
  // Predicated region
  $region6: #{cls_embedding.1} parent=0 // pred_check
    _
  $region7: #{cls_embedding.1} parent=0 // pred_check_branch
    %23 = sbr.rel (%p20) target = $region9
  $region8: #{cls_embedding.1} parent=0 // pred_region
    %s40 = sand.u32 1, 7
    %p41 = scmp.eq.s32.totalorder %s40, 0
    %p42 = pneg %p41
    // Predicated region
    $region21: #{cls_embedding.1} parent=8 // pred_check
      _
    $region22: #{cls_embedding.1} parent=8 // pred_check_branch
      %44 = sbr.rel (%p41) target = $region24
    $region23: #{cls_embedding.1} parent=8 // pred_region
      %s45 = sand.u32 1, 7
      %s46 = ssub.s32 1, %s45
      %s47 = scalar_lea.vmem [#allocation2], %s46
      %s48 = ssub.s32 1, %s45
      %s49 = scalar_lea.vmem %s2, %s48
      %s50 = sshllo.u32 0, %s45
      loop: start=0, step=1, limit=1
      $region25: #{cls_embedding.1} parent=23 // loop_pre_header
        _
      $region26: #{cls_embedding.1} parent=23 // loop_header
        %s52 = sphi 0, %s56
        %p53 = scmp.ge.s32.totalorder %s52, 1
        %s57 = sphi %s47, %s47
        %s58 = sphi %s49, %s49
      $region27: #{cls_embedding.1} parent=23 // loop_header_branch
        %55 = sbr.rel (%p53) target = $region31
      $region28: #{cls_embedding.1} parent=23 // loop_body
        %v59 = vld [vmem:[%s57] sm:%s50]
        %60 = vst [vmem:[%s58] sm:%s50] %v59
        %v61 = vld [vmem:[%s57 + $0x1] sm:%s50]
        %62 = vst [vmem:[%s58 + $0x10] sm:%s50] %v61
      $region29: #{cls_embedding.1} parent=23 // loop_footer
        %s56 = sadd.s32 1, %s52
      $region30: #{cls_embedding.1} parent=23 // loop_footer_branch
        %51 = sbr.rel target = $region26
      $region31: #{cls_embedding.1} parent=23 // loop_exit
        _
    $region24: #{cls_embedding.1} parent=8 // pred_fallthru
      _
  $region9: #{cls_embedding.1} parent=0 // pred_fallthru
    _
  // Predicated region
  $region10: #{cls_embedding.1} parent=0 // pred_check
    %p24 = pneg %p20
  $region11: #{cls_embedding.1} parent=0 // pred_check_branch
    %26 = sbr.rel (%p24) target = $region13
  $region12: #{cls_embedding.1} parent=0 // pred_region
    %s27 = sshllo.u32 0, 1
    loop: start=0, step=1, limit=1
    $region14: #{cls_embedding.1} parent=12 // loop_pre_header
      _
    $region15: #{cls_embedding.1} parent=12 // loop_header
      %s29 = sphi 0, %s33
      %p30 = scmp.ge.s32.totalorder %s29, 1
      %s34 = sphi [#allocation2], [#allocation2]
      %s35 = sphi %s2, %s2
    $region16: #{cls_embedding.1} parent=12 // loop_header_branch
      %32 = sbr.rel (%p30) target = $region20
    $region17: #{cls_embedding.1} parent=12 // loop_body
      %v36 = vld [vmem:[%s34] sm:%s27]
      %37 = vst [vmem:[%s35] sm:%s27] %v36
      %v38 = vld [vmem:[%s34 + $0x1] sm:%s27]
      %39 = vst [vmem:[%s35 + $0x10] sm:%s27] %v38
    $region18: #{cls_embedding.1} parent=12 // loop_footer
      %s33 = sadd.s32 1, %s29
    $region19: #{cls_embedding.1} parent=12 // loop_footer_branch
      %28 = sbr.rel target = $region15
    $region20: #{cls_embedding.1} parent=12 // loop_exit
      _
  $region13: #{cls_embedding.1} parent=0 // pred_fallthru
    _
  // Predicated region
  $region32: #{cls_embedding.1} parent=0 // pred_check
    _
  $region33: #{cls_embedding.1} parent=0 // pred_check_branch
    %65 = sbr.rel (0) target = $region35
  $region34: #{cls_embedding.1} parent=0 // pred_region
    %66 = vsyncadd %s18, 32
  $region35: #{cls_embedding.1} parent=0 // pred_fallthru
    _
  %s67 = smul.u32 2, 1
  %s68 = smul.u32 %s67, 1
  %s69 = sshll.u32 %s68, 4
  %70 = dma.done %s18, %s69
  %s71 = smul.u32 2, 8
  %s72 = smul.u32 %s71, 1
  %s73 = sshll.u32 %s72, 4
  %74 = dma.done [#allocation3], %s73
  %75 = vsyncmov [#allocation3]
  %s76 = vpop.sfrf %75
  %p77 = scmp.eq.s32.totalorder %s76, 0
  %p78 = pneg %p77
  %80 = shalt.err (%p78)
  %s81 = scalar_lea.sflag [#allocation3], 1
  %82 = vsyncmov %s81
  %s83 = vpop.sfrf %82
  %p84 = scmp.eq.s32.totalorder %s83, 0
  %p85 = pneg %p84
  %87 = shalt.err (%p85)

</llo_original>
